<compile_context>
chip_gen: v5e
topology: v5e:2x2
jax: 0.10.0
libtpu: 0.0.40
codegen_flags: <defaults>
</compile_context>

<pallas_src>
import functools

import jax
import jax.numpy as jnp
from jax import lax
from jax.experimental import pallas as pl
from jax.experimental.pallas import tpu as pltpu


def _round_up(x: int, m: int) -> int:
    return ((x + m - 1) // m) * m


# ---------------------------------------------------------------------------
# Fused Pallas kernel: the ENTIRE StackMLP for one batch tile.
#   x_ref : (TB, Dpad)           input tile (features zero-padded to Dpad)
#   w_ref : (L, Dpad, Dpad)      stacked, zero-padded weights (x @ W layout)
#   p_ref : (L, 3, Dpad)         packed [bias, gamma, beta] per layer
#   o_ref : (TB, Dpad)           output tile (padded columns are 0)
# layer_cfg: tuple of (d_out_actual, apply_act, apply_ln) per layer (static).
# ---------------------------------------------------------------------------
def _stack_mlp_kernel(x_ref, w_ref, p_ref, o_ref, *,
                      layer_cfg, eps: float, compute_dtype):
    # Running activation stays in f32 for the whole stack; cast once at the end.
    act = x_ref[...].astype(jnp.float32)

    for l, (d_out, apply_act, apply_ln) in enumerate(layer_cfg):
        w = w_ref[l]                       # (Dpad, Dpad), loaded once per layer
        pv = p_ref[l]                      # (3, Dpad): bias / gamma / beta

        # Linear: y = act @ W + b   (MXU, f32 accumulation)
        y = jnp.dot(act.astype(compute_dtype), w.astype(compute_dtype),
                    preferred_element_type=jnp.float32)
        y = y + pv[0:1, :]                 # bias (zero in padded columns)

        if apply_act:
            # CELU(alpha=1): x if x > 0 else exp(x) - 1.  CELU(0)=0, so padded
            # columns (which are exactly 0 after the linear) stay 0.
            y = jnp.where(y > 0.0, y, jnp.exp(jnp.minimum(y, 0.0)) - 1.0)

        if apply_ln:
            # LayerNorm over the *actual* d_out features.  Padded columns are
            # 0, so sums over the padded width equal sums over real features;
            # divide by d_out (not Dpad) to get the true mean / variance.
            inv_d = 1.0 / float(d_out)
            s1 = jnp.sum(y, axis=-1, keepdims=True)
            s2 = jnp.sum(y * y, axis=-1, keepdims=True)
            mean = s1 * inv_d
            var = jnp.maximum(s2 * inv_d - mean * mean, 0.0)
            y = (y - mean) * lax.rsqrt(var + eps)
            # gamma/beta are zero in padded columns -> padded columns back to 0.
            y = y * pv[1:2, :] + pv[2:3, :]

        act = y

    o_ref[...] = act.astype(o_ref.dtype)


# ---------------------------------------------------------------------------
# StackMLP forward: pack/pad params, launch ONE fused pallas_call.
# ---------------------------------------------------------------------------
def stack_mlp_forward(x, params, *, norm_act_final: bool,
                      phase_layer_norm: bool, eps: float = 1e-5,
                      batch_tile: int = 128,
                      compute_dtype=jnp.float32):
    B, d_in = x.shape
    L = len(params)
    dims = [d_in] + [int(p["w"].shape[1]) for p in params]
    d_pad = max(128, _round_up(max(dims), 128))   # lane-dense feature width

    # Stack + zero-pad all per-layer parameters (bias/gamma/beta packed so the
    # kernel needs only two parameter inputs / two DMA descriptors).
    w_stack = jnp.zeros((L, d_pad, d_pad), jnp.float32)
    p_stack = jnp.zeros((L, 3, d_pad), jnp.float32)
    for l, p in enumerate(params):
        din_l, dout_l = p["w"].shape
        w_stack = w_stack.at[l, :din_l, :dout_l].set(p["w"].astype(jnp.float32))
        p_stack = p_stack.at[l, 0, :dout_l].set(p["b"].astype(jnp.float32))
        p_stack = p_stack.at[l, 1, :dout_l].set(p["gamma"].astype(jnp.float32))
        p_stack = p_stack.at[l, 2, :dout_l].set(p["beta"].astype(jnp.float32))

    # Static per-layer config (matches the PyTorch construction exactly:
    # the last layer gets act+LN only if norm_act_final=True).
    layer_cfg = []
    for l in range(L):
        is_last = (l == L - 1)
        apply_act = (not is_last) or norm_act_final
        apply_ln = apply_act and phase_layer_norm
        layer_cfg.append((dims[l + 1], apply_act, apply_ln))

    # Batch tiling: multiples of 8 sublanes, capped at `batch_tile` rows.
    tb = min(batch_tile, _round_up(B, 8))
    b_pad = _round_up(B, tb)
    x_p = jnp.zeros((b_pad, d_pad), x.dtype).at[:B, :d_in].set(x)

    kernel = functools.partial(_stack_mlp_kernel, layer_cfg=tuple(layer_cfg),
                               eps=eps, compute_dtype=compute_dtype)

    out_p = pl.pallas_call(
        kernel,
        out_shape=jax.ShapeDtypeStruct((b_pad, d_pad), x.dtype),
        grid=(b_pad // tb,),
        in_specs=[
            # x: tiled over batch, double-buffered by the pipeline.
            pl.BlockSpec((tb, d_pad), lambda i: (i, 0)),
            # stacked weights / packed params: same block every step -> DMA'd
            # once, stay resident in VMEM across the whole batch grid.
            pl.BlockSpec((L, d_pad, d_pad), lambda i: (0, 0, 0)),
            pl.BlockSpec((L, 3, d_pad), lambda i: (0, 0, 0)),
        ],
        out_specs=pl.BlockSpec((tb, d_pad), lambda i: (i, 0)),
        compiler_params=pltpu.CompilerParams(
            dimension_semantics=("parallel",),       # megacore over batch
            vmem_limit_bytes=32 * 1024 * 1024,       # safe on v5e/v6e/v7x
        ),
    )(x_p, w_stack, p_stack)

    # Strip batch and feature padding.
    return out_p[:B, :dims[-1]]
    # TODO(synk): for very large/deep stacks, tile the weight K/N dims over
    # extra grid axes instead of padding every layer to a single Dpad x Dpad
    # block (needed to stay inside v7x's 64 MiB VMEM at realistic widths).


# ---------------------------------------------------------------------------
# Deterministic parameter init (mimics nn.Linear default uniform init shapes)
# ---------------------------------------------------------------------------
def init_params(key, dim_inp, filters):
    params = []
    d_prev = dim_inp
    for f in filters:
        key, kw, kb = jax.random.split(key, 3)
        bound = 1.0 / jnp.sqrt(d_prev)
        w = jax.random.uniform(kw, (d_prev, f), jnp.float32, -bound, bound)
        b = jax.random.uniform(kb, (f,), jnp.float32, -bound, bound)
        gamma = jnp.ones((f,), jnp.float32)   # LayerNorm weight
        beta = jnp.zeros((f,), jnp.float32)   # LayerNorm bias
        params.append(dict(w=w, b=b, gamma=gamma, beta=beta))
        d_prev = f
    return params


# ---------------------------------------------------------------------------
# Pure-JAX reference for correctness checking
# ---------------------------------------------------------------------------
def reference_forward(x, params, *, norm_act_final, phase_layer_norm,
                      eps=1e-5):
    n = len(params)
    for i, p in enumerate(params):
        is_last = (i == n - 1)
        x = x @ p["w"] + p["b"]
        if is_last and not norm_act_final:
            break
        x = jnp.where(x > 0.0, x, jnp.exp(jnp.minimum(x, 0.0)) - 1.0)  # CELU
        if phase_layer_norm:
            mean = jnp.mean(x, axis=-1, keepdims=True)
            var = jnp.mean((x - mean) ** 2, axis=-1, keepdims=True)
            x = (x - mean) * lax.rsqrt(var + eps)
            x = x * p["gamma"] + p["beta"]
    return x


if __name__ == "__main__":
    key = jax.random.PRNGKey(0)
    k_x, k_p = jax.random.split(key)

    batch = 8
    dim_inp = 32
    filters = [64, 32]
    norm_act_final = True
    phase_layer_norm = True

    x = jax.random.normal(k_x, (batch, dim_inp), jnp.float32)
    params = init_params(k_p, dim_inp, filters)

    out = stack_mlp_forward(x, params,
                            norm_act_final=norm_act_final,
                            phase_layer_norm=phase_layer_norm)
    out = jax.block_until_ready(out)

    ref = reference_forward(x, params,
                            norm_act_final=norm_act_final,
                            phase_layer_norm=phase_layer_norm)
    assert out.shape == (batch, filters[-1])
    assert jnp.allclose(out, ref, atol=1e-4, rtol=1e-4), "mismatch vs reference"

    # Also exercise the norm_act_final=False path (last Linear only).
    out2 = jax.block_until_ready(
        stack_mlp_forward(x, params, norm_act_final=False,
                          phase_layer_norm=phase_layer_norm))
    ref2 = reference_forward(x, params, norm_act_final=False,
                             phase_layer_norm=phase_layer_norm)
    assert jnp.allclose(out2, ref2, atol=1e-4, rtol=1e-4), "mismatch (no final act)"

    print("KERNEL_OK")
</pallas_src>

<mosaic_0001>
module attributes {stable_mosaic.version = 11 : i64} {
  func.func @_stack_mlp_kernel(%arg0: i32, %arg1: memref<8x128xf32, #tpu.memory_space<vmem>>, %arg2: memref<2x128x128xf32, #tpu.memory_space<vmem>>, %arg3: memref<2x3x128xf32, #tpu.memory_space<vmem>>, %arg4: memref<8x128xf32, #tpu.memory_space<vmem>>) attributes {dimension_semantics = [#tpu.dimension_semantics<parallel>], iteration_bounds = array<i64: 1>, scalar_prefetch = 0 : i64, scratch_operands = 0 : i64, tpu.core_type = #tpu.core_type<tc>, window_params = [{transform_indices = @transform_0, window_bounds = array<i64: 8, 128>}, {pipeline_mode = #tpu.pipeline_mode<synchronous>, transform_indices = @transform_1, window_bounds = array<i64: 2, 128, 128>}, {pipeline_mode = #tpu.pipeline_mode<synchronous>, transform_indices = @transform_2, window_bounds = array<i64: 2, 3, 128>}, {transform_indices = @transform_3, window_bounds = array<i64: 8, 128>}]} {
    %c0 = arith.constant 0 : index
    %c0_0 = arith.constant 0 : index
    %0 = vector.load %arg1[%c0, %c0_0] : memref<8x128xf32, #tpu.memory_space<vmem>>, vector<8x128xf32>
    %c0_1 = arith.constant 0 : index
    %c0_2 = arith.constant 0 : index
    %c0_3 = arith.constant 0 : index
    %1 = vector.load %arg2[%c0_1, %c0_2, %c0_3] : memref<2x128x128xf32, #tpu.memory_space<vmem>>, vector<1x128x128xf32>
    %2 = vector.shape_cast %1 : vector<1x128x128xf32> to vector<128x128xf32>
    %c0_4 = arith.constant 0 : index
    %c0_5 = arith.constant 0 : index
    %c0_6 = arith.constant 0 : index
    %3 = vector.load %arg3[%c0_4, %c0_5, %c0_6] : memref<2x3x128xf32, #tpu.memory_space<vmem>>, vector<1x3x128xf32>
    %4 = vector.shape_cast %3 : vector<1x3x128xf32> to vector<3x128xf32>
    %cst = arith.constant dense<0.000000e+00> : vector<8x128xf32>
    %5 = tpu.matmul %0, %2, %cst {dimension_numbers = #tpu.dot_dimension_numbers<[1], [0], [0], [1], [0, 0, 1, 1], [], []>} : vector<8x128xf32>, vector<128x128xf32>, vector<8x128xf32> -> vector<8x128xf32>
    %6 = vector.extract_strided_slice %4 {offsets = [0, 0], sizes = [1, 128], strides = [1, 1]} : vector<3x128xf32> to vector<1x128xf32>
    %7 = vector.broadcast %6 : vector<1x128xf32> to vector<8x128xf32>
    %8 = arith.addf %5, %7 : vector<8x128xf32>
    %cst_7 = arith.constant 0.000000e+00 : f32
    %9 = vector.broadcast %cst_7 : f32 to vector<8x128xf32>
    %10 = arith.cmpf ogt, %8, %9 : vector<8x128xf32>
    %cst_8 = arith.constant 0.000000e+00 : f32
    %11 = vector.broadcast %cst_8 : f32 to vector<8x128xf32>
    %12 = arith.minimumf %8, %11 : vector<8x128xf32>
    %13 = math.exp %12 : vector<8x128xf32>
    %cst_9 = arith.constant 1.000000e+00 : f32
    %14 = vector.broadcast %cst_9 : f32 to vector<8x128xf32>
    %15 = arith.subf %13, %14 : vector<8x128xf32>
    %16 = arith.select %10, %8, %15 : vector<8x128xi1>, vector<8x128xf32>
    %cst_10 = arith.constant dense<0.000000e+00> : vector<8xf32>
    %17 = vector.multi_reduction <add>, %16, %cst_10 [1] : vector<8x128xf32> to vector<8xf32>
    %18 = vector.shape_cast %17 : vector<8xf32> to vector<8x1xf32>
    %19 = arith.mulf %16, %16 : vector<8x128xf32>
    %cst_11 = arith.constant dense<0.000000e+00> : vector<8xf32>
    %20 = vector.multi_reduction <add>, %19, %cst_11 [1] : vector<8x128xf32> to vector<8xf32>
    %21 = vector.shape_cast %20 : vector<8xf32> to vector<8x1xf32>
    %cst_12 = arith.constant 1.562500e-02 : f32
    %22 = vector.broadcast %cst_12 : f32 to vector<8x1xf32>
    %23 = arith.mulf %18, %22 : vector<8x1xf32>
    %cst_13 = arith.constant 1.562500e-02 : f32
    %24 = vector.broadcast %cst_13 : f32 to vector<8x1xf32>
    %25 = arith.mulf %21, %24 : vector<8x1xf32>
    %26 = arith.mulf %23, %23 : vector<8x1xf32>
    %27 = arith.subf %25, %26 : vector<8x1xf32>
    %cst_14 = arith.constant 0.000000e+00 : f32
    %28 = vector.broadcast %cst_14 : f32 to vector<8x1xf32>
    %29 = arith.maximumf %27, %28 : vector<8x1xf32>
    %30 = vector.broadcast %23 : vector<8x1xf32> to vector<8x128xf32>
    %31 = arith.subf %16, %30 : vector<8x128xf32>
    %cst_15 = arith.constant 9.99999974E-6 : f32
    %32 = vector.broadcast %cst_15 : f32 to vector<8x1xf32>
    %33 = arith.addf %29, %32 : vector<8x1xf32>
    %34 = math.rsqrt %33 : vector<8x1xf32>
    %35 = vector.broadcast %34 : vector<8x1xf32> to vector<8x128xf32>
    %36 = arith.mulf %31, %35 : vector<8x128xf32>
    %37 = vector.extract_strided_slice %4 {offsets = [1, 0], sizes = [1, 128], strides = [1, 1]} : vector<3x128xf32> to vector<1x128xf32>
    %38 = vector.broadcast %37 : vector<1x128xf32> to vector<8x128xf32>
    %39 = arith.mulf %36, %38 : vector<8x128xf32>
    %40 = vector.extract_strided_slice %4 {offsets = [2, 0], sizes = [1, 128], strides = [1, 1]} : vector<3x128xf32> to vector<1x128xf32>
    %41 = vector.broadcast %40 : vector<1x128xf32> to vector<8x128xf32>
    %42 = arith.addf %39, %41 : vector<8x128xf32>
    %c1 = arith.constant 1 : index
    %c0_16 = arith.constant 0 : index
    %c0_17 = arith.constant 0 : index
    %43 = vector.load %arg2[%c1, %c0_16, %c0_17] : memref<2x128x128xf32, #tpu.memory_space<vmem>>, vector<1x128x128xf32>
    %44 = vector.shape_cast %43 : vector<1x128x128xf32> to vector<128x128xf32>
    %c1_18 = arith.constant 1 : index
    %c0_19 = arith.constant 0 : index
    %c0_20 = arith.constant 0 : index
    %45 = vector.load %arg3[%c1_18, %c0_19, %c0_20] : memref<2x3x128xf32, #tpu.memory_space<vmem>>, vector<1x3x128xf32>
    %46 = vector.shape_cast %45 : vector<1x3x128xf32> to vector<3x128xf32>
    %cst_21 = arith.constant dense<0.000000e+00> : vector<8x128xf32>
    %47 = tpu.matmul %42, %44, %cst_21 {dimension_numbers = #tpu.dot_dimension_numbers<[1], [0], [0], [1], [0, 0, 1, 1], [], []>} : vector<8x128xf32>, vector<128x128xf32>, vector<8x128xf32> -> vector<8x128xf32>
    %48 = vector.extract_strided_slice %46 {offsets = [0, 0], sizes = [1, 128], strides = [1, 1]} : vector<3x128xf32> to vector<1x128xf32>
    %49 = vector.broadcast %48 : vector<1x128xf32> to vector<8x128xf32>
    %50 = arith.addf %47, %49 : vector<8x128xf32>
    %cst_22 = arith.constant 0.000000e+00 : f32
    %51 = vector.broadcast %cst_22 : f32 to vector<8x128xf32>
    %52 = arith.cmpf ogt, %50, %51 : vector<8x128xf32>
    %cst_23 = arith.constant 0.000000e+00 : f32
    %53 = vector.broadcast %cst_23 : f32 to vector<8x128xf32>
    %54 = arith.minimumf %50, %53 : vector<8x128xf32>
    %55 = math.exp %54 : vector<8x128xf32>
    %cst_24 = arith.constant 1.000000e+00 : f32
    %56 = vector.broadcast %cst_24 : f32 to vector<8x128xf32>
    %57 = arith.subf %55, %56 : vector<8x128xf32>
    %58 = arith.select %52, %50, %57 : vector<8x128xi1>, vector<8x128xf32>
    %cst_25 = arith.constant dense<0.000000e+00> : vector<8xf32>
    %59 = vector.multi_reduction <add>, %58, %cst_25 [1] : vector<8x128xf32> to vector<8xf32>
    %60 = vector.shape_cast %59 : vector<8xf32> to vector<8x1xf32>
    %61 = arith.mulf %58, %58 : vector<8x128xf32>
    %cst_26 = arith.constant dense<0.000000e+00> : vector<8xf32>
    %62 = vector.multi_reduction <add>, %61, %cst_26 [1] : vector<8x128xf32> to vector<8xf32>
    %63 = vector.shape_cast %62 : vector<8xf32> to vector<8x1xf32>
    %cst_27 = arith.constant 3.125000e-02 : f32
    %64 = vector.broadcast %cst_27 : f32 to vector<8x1xf32>
    %65 = arith.mulf %60, %64 : vector<8x1xf32>
    %cst_28 = arith.constant 3.125000e-02 : f32
    %66 = vector.broadcast %cst_28 : f32 to vector<8x1xf32>
    %67 = arith.mulf %63, %66 : vector<8x1xf32>
    %68 = arith.mulf %65, %65 : vector<8x1xf32>
    %69 = arith.subf %67, %68 : vector<8x1xf32>
    %cst_29 = arith.constant 0.000000e+00 : f32
    %70 = vector.broadcast %cst_29 : f32 to vector<8x1xf32>
    %71 = arith.maximumf %69, %70 : vector<8x1xf32>
    %72 = vector.broadcast %65 : vector<8x1xf32> to vector<8x128xf32>
    %73 = arith.subf %58, %72 : vector<8x128xf32>
    %cst_30 = arith.constant 9.99999974E-6 : f32
    %74 = vector.broadcast %cst_30 : f32 to vector<8x1xf32>
    %75 = arith.addf %71, %74 : vector<8x1xf32>
    %76 = math.rsqrt %75 : vector<8x1xf32>
    %77 = vector.broadcast %76 : vector<8x1xf32> to vector<8x128xf32>
    %78 = arith.mulf %73, %77 : vector<8x128xf32>
    %79 = vector.extract_strided_slice %46 {offsets = [1, 0], sizes = [1, 128], strides = [1, 1]} : vector<3x128xf32> to vector<1x128xf32>
    %80 = vector.broadcast %79 : vector<1x128xf32> to vector<8x128xf32>
    %81 = arith.mulf %78, %80 : vector<8x128xf32>
    %82 = vector.extract_strided_slice %46 {offsets = [2, 0], sizes = [1, 128], strides = [1, 1]} : vector<3x128xf32> to vector<1x128xf32>
    %83 = vector.broadcast %82 : vector<1x128xf32> to vector<8x128xf32>
    %84 = arith.addf %81, %83 : vector<8x128xf32>
    %c0_31 = arith.constant 0 : index
    %c0_32 = arith.constant 0 : index
    %85 = vector.load %arg4[%c0_31, %c0_32] : memref<8x128xf32, #tpu.memory_space<vmem>>, vector<8x128xf32>
    tpu.vector_store %arg4[%c0_31, %c0_32], %84 {strides = array<i32>} : memref<8x128xf32, #tpu.memory_space<vmem>>, vector<8x128xf32>,
    return
  }
  func.func @transform_0(%arg0: i32) -> (i32, i32) {
    %c0_i32 = arith.constant 0 : i32
    %c0_i32_0 = arith.constant 0 : i32
    return %arg0, %c0_i32 : i32, i32
  }
  func.func @transform_1(%arg0: i32) -> (i32, i32, i32) {
    %c0_i32 = arith.constant 0 : i32
    %c0_i32_0 = arith.constant 0 : i32
    %c0_i32_1 = arith.constant 0 : i32
    %c0_i32_2 = arith.constant 0 : i32
    return %c0_i32, %c0_i32_0, %c0_i32_1 : i32, i32, i32
  }
  func.func @transform_2(%arg0: i32) -> (i32, i32, i32) {
    %c0_i32 = arith.constant 0 : i32
    %c0_i32_0 = arith.constant 0 : i32
    %c0_i32_1 = arith.constant 0 : i32
    %c0_i32_2 = arith.constant 0 : i32
    return %c0_i32, %c0_i32_0, %c0_i32_1 : i32, i32, i32
  }
  func.func @transform_3(%arg0: i32) -> (i32, i32) {
    %c0_i32 = arith.constant 0 : i32
    %c0_i32_0 = arith.constant 0 : i32
    return %arg0, %c0_i32 : i32, i32
  }
}

</mosaic_0001>

<llo_original>
// kernel: tpu_custom_call.1
$region0: #{tpu_custom_call.1}
  #allocation0 [shape = 'u32[]', space=smem, size = 0x4, offset = 0x4, fixed_abs, tag = 'smem constant byte address 0x4 - core index']
  #allocation1 [shape = 'u32[72,128]{1,0:T(1,128)}', space=vmem, size = 0x9000, scoped, tag = 'internal scratch']
  %s0 = inlined_call_operand.vmem [shape: f32[8,128], index: 0, kind: input, shape index: {}]
  %s1 = inlined_call_operand.hbm [shape: f32[2,128,128], index: 1, kind: input, shape index: {}]
  %s2 = inlined_call_operand.vmem [shape: f32[2,3,128], index: 2, kind: input, shape index: {}]
  %s3 = inlined_call_operand.hbm [shape: f32[8,128], index: 3, kind: output, shape index: {}]
  %s4 = sld [smem:[#allocation0]]
  $region26: #{tpu_custom_call.1} parent=0
    _
  %s6 = ssub.s32 1, %s4
  %s7 = scalar_select 0, %s6, %s4
  $region1: #{tpu_custom_call.1} parent=0
    #allocation2 [shape = 'u8[131072]{0}', space=vmem, size = 0x20000, scoped, tag = 'input window, operand 1, single buffered']
    #allocation3 [shape = 's32[1]{0}', space=sflag, size = 0x4, scoped, tag = 'scoped memory for tpu_custom_call.1']
    #allocation4 [shape = 's32[1]{0}', space=sflag, size = 0x4, scoped, tag = 'scoped memory for tpu_custom_call.1']
    #allocation5 [shape = 'u8[4096]{0}', space=vmem, size = 0x1000, scoped, tag = 'output window, operand 0, single buffered']
    %8 = vsyncpa [#allocation3], 0
    %9 = vsyncpa [#allocation4], 0
    // Predicated region
    $region2: #{tpu_custom_call.1} parent=1 // pred_check
      _
    $region3: #{tpu_custom_call.1} parent=1 // pred_check_branch
      %11 = sbr.rel (0) target = $region5
    $region4: #{tpu_custom_call.1} parent=1 // pred_region
      _
    $region5: #{tpu_custom_call.1} parent=1 // pred_fallthru
      _
    // Predicated region
    $region6: #{tpu_custom_call.1} parent=1 // pred_check
      _
    $region7: #{tpu_custom_call.1} parent=1 // pred_check_branch
      %13 = sbr.rel (0) target = $region9
    $region8: #{tpu_custom_call.1} parent=1 // pred_region
      %15 = vsyncadd [#allocation3], 0
      %s16 = sshll.u32 %s1, 4
      %s17 = int_to_ptr.hbm [resolvable:$true] %s16
      %s18 = sshll.u32 [#allocation2], 4
      %s19 = int_to_ptr.vmem [resolvable:$true] %s18
      %24 = dma.hbm_to_vmem [thread:$0]  %s17, 4096, %s19, [#allocation3], 128, 128, 8
    $region9: #{tpu_custom_call.1} parent=1 // pred_fallthru
      _
    // Predicated region
    $region10: #{tpu_custom_call.1} parent=1 // pred_check
      _
    $region11: #{tpu_custom_call.1} parent=1 // pred_check_branch
      %26 = sbr.rel (0) target = $region13
    $region12: #{tpu_custom_call.1} parent=1 // pred_region
      _
    $region13: #{tpu_custom_call.1} parent=1 // pred_fallthru
      _
    // Predicated region
    $region14: #{tpu_custom_call.1} parent=1 // pred_check
      _
    $region15: #{tpu_custom_call.1} parent=1 // pred_check_branch
      %28 = sbr.rel (0) target = $region17
    $region16: #{tpu_custom_call.1} parent=1 // pred_region
      %30 = dma.done [#allocation3], 4096
    $region17: #{tpu_custom_call.1} parent=1 // pred_fallthru
      _
    %v31 = vld [vmem:[%s0] sm:$0xff]
    %v32 = vld [vmem:[#allocation2] sm:$0xff]
    %v33 = vld [vmem:[#allocation2 + $0x8] sm:$0xff]
    %v34 = vld [vmem:[#allocation2 + $0x10] sm:$0xff]
    %v35 = vld [vmem:[#allocation2 + $0x18] sm:$0xff]
    %v36 = vld [vmem:[#allocation2 + $0x20] sm:$0xff]
    %v37 = vld [vmem:[#allocation2 + $0x28] sm:$0xff]
    %v38 = vld [vmem:[#allocation2 + $0x30] sm:$0xff]
    %v39 = vld [vmem:[#allocation2 + $0x38] sm:$0xff]
    %v40 = vld [vmem:[#allocation2 + $0x40] sm:$0xff]
    %v41 = vld [vmem:[#allocation2 + $0x48] sm:$0xff]
    %v42 = vld [vmem:[#allocation2 + $0x50] sm:$0xff]
    %v43 = vld [vmem:[#allocation2 + $0x58] sm:$0xff]
    %v44 = vld [vmem:[#allocation2 + $0x60] sm:$0xff]
    %v45 = vld [vmem:[#allocation2 + $0x68] sm:$0xff]
    %v46 = vld [vmem:[#allocation2 + $0x70] sm:$0xff]
    %v47 = vld [vmem:[#allocation2 + $0x78] sm:$0xff]
    %v48 = vld [vmem:[%s2] sm:$0x7]
    %v49 = vperm.slane %v48, 0
    %50 = vmatpush.msra.mxu0 %v47
    %51 = vmatpush.msra.mxu0 %v46
    %52 = vmatpush.msra.mxu0 %v45
    %53 = vmatpush.msra.mxu0 %v44
    %54 = vmatpush.msra.mxu0 %v43
    %55 = vmatpush.msra.mxu0 %v42
    %56 = vmatpush.msra.mxu0 %v41
    %57 = vmatpush.msra.mxu0 %v40
    %58 = vmatpush.msra.mxu0 %v39
    %59 = vmatpush.msra.mxu0 %v38
    %60 = vmatpush.msra.mxu0 %v37
    %61 = vmatpush.msra.mxu0 %v36
    %62 = vmatpush.msra.mxu0 %v35
    %63 = vmatpush.msra.mxu0 %v34
    %64 = vmatpush.msra.mxu0 %v33
    %65 = vmatpush.msra.mxu0 %v32
    %66 = vmatmul.f32.gmra.mxu0 %v31
    %v67 = vpop.f32.mrf.mxu0
    %v68 = vadd.f32 %v49, %v67
    %69 = vdwg.mxu0
    %vm70 = vcmp.gt.f32.partialorder %v68, 0.0
    %v71 = vmin.f32 %v68, 0.0
    %v72 = vmul.f32 %v71, 1.442695
    %v73 = vpow.pop %v72
    %v74 = vsub.f32 %v73, 1.0
    %v75 = vsel %vm70, %v68, %v74
    %76 = vadd.xlane.f32.xlu0 %v75
    %v77 = vpop.xlane.xlu0 %76
    %v78 = vmul.f32 %v75, %v75
    %79 = vadd.xlane.f32.xlu0 %v78
    %v80 = vpop.xlane.xlu0 %79
    %v81 = vmul.f32 %v77, 0.015625
    %v82 = vmul.f32 %v80, 0.015625
    %v83 = vmul.f32 %v81, %v81
    %v84 = vsub.f32 %v82, %v83
    %v85 = vmax.f32 %v84, 0.0
    %v86 = vsub.f32 %v75, %v81
    %v87 = vadd.f32 %v85, 1e-05
    %v88 = vrsqrt.pop %v87
    %v89 = vmul.f32 %v88, %v87
    %v90 = vmul.f32 %v89, %v88
    %v91 = vmul.f32 0.5, %v90
    %v92 = vsub.f32 1.5, %v91
    %v93 = vmul.f32 %v88, %v92
    %vm94 = vweird.f32 %v87
    %vm95 = vweird.f32 %v88
    %vm96 = vmor %vm94, %vm95
    %v97 = vsel %vm96, %v88, %v93
    %v98 = vmul.f32 %v86, %v97
    %v99 = vperm.slane %v48, 1
    %v100 = vmul.f32 %v98, %v99
    %v101 = vperm.slane %v48, 2
    %v102 = vadd.f32 %v100, %v101
    %s103 = scalar_lea.vmem [#allocation2], 128
    %v104 = vld [vmem:[%s103] sm:$0xff]
    %v105 = vld [vmem:[%s103 + $0x8] sm:$0xff]
    %v106 = vld [vmem:[%s103 + $0x10] sm:$0xff]
    %v107 = vld [vmem:[%s103 + $0x18] sm:$0xff]
    %v108 = vld [vmem:[%s103 + $0x20] sm:$0xff]
    %v109 = vld [vmem:[%s103 + $0x28] sm:$0xff]
    %v110 = vld [vmem:[%s103 + $0x30] sm:$0xff]
    %v111 = vld [vmem:[%s103 + $0x38] sm:$0xff]
    %v112 = vld [vmem:[%s103 + $0x40] sm:$0xff]
    %v113 = vld [vmem:[%s103 + $0x48] sm:$0xff]
    %v114 = vld [vmem:[%s103 + $0x50] sm:$0xff]
    %v115 = vld [vmem:[%s103 + $0x58] sm:$0xff]
    %v116 = vld [vmem:[%s103 + $0x60] sm:$0xff]
    %v117 = vld [vmem:[%s103 + $0x68] sm:$0xff]
    %v118 = vld [vmem:[%s103 + $0x70] sm:$0xff]
    %v119 = vld [vmem:[%s103 + $0x78] sm:$0xff]
    %s120 = scalar_lea.vmem %s2, 4
    %v121 = vld [vmem:[%s120] sm:$0x7]
    %v122 = vperm.slane %v121, 0
    %123 = vmatpush.msra.mxu0 %v119
    %124 = vmatpush.msra.mxu0 %v118
    %125 = vmatpush.msra.mxu0 %v117
    %126 = vmatpush.msra.mxu0 %v116
    %127 = vmatpush.msra.mxu0 %v115
    %128 = vmatpush.msra.mxu0 %v114
    %129 = vmatpush.msra.mxu0 %v113
    %130 = vmatpush.msra.mxu0 %v112
    %131 = vmatpush.msra.mxu0 %v111
    %132 = vmatpush.msra.mxu0 %v110
    %133 = vmatpush.msra.mxu0 %v109
    %134 = vmatpush.msra.mxu0 %v108
    %135 = vmatpush.msra.mxu0 %v107
    %136 = vmatpush.msra.mxu0 %v106
    %137 = vmatpush.msra.mxu0 %v105
    %138 = vmatpush.msra.mxu0 %v104
    %139 = vmatmul.f32.gmra.mxu0 %v102
    %v140 = vpop.f32.mrf.mxu0
    %v141 = vadd.f32 %v122, %v140
    %142 = vdwg.mxu0
    %vm143 = vcmp.gt.f32.partialorder %v141, 0.0
    %v144 = vmin.f32 %v141, 0.0
    %v145 = vmul.f32 %v144, 1.442695
    %v146 = vpow.pop %v145
    %v147 = vsub.f32 %v146, 1.0
    %v148 = vsel %vm143, %v141, %v147
    %149 = vadd.xlane.f32.xlu0 %v148
    %v150 = vpop.xlane.xlu0 %149
    %v151 = vmul.f32 %v148, %v148
    %152 = vadd.xlane.f32.xlu0 %v151
    %v153 = vpop.xlane.xlu0 %152
    %v154 = vmul.f32 %v150, 0.03125
    %v155 = vmul.f32 %v153, 0.03125
    %v156 = vmul.f32 %v154, %v154
    %v157 = vsub.f32 %v155, %v156
    %v158 = vmax.f32 %v157, 0.0
    %v159 = vsub.f32 %v148, %v154
    %v160 = vadd.f32 %v158, 1e-05
    %v161 = vrsqrt.pop %v160
    %v162 = vmul.f32 %v161, %v160
    %v163 = vmul.f32 %v162, %v161
    %v164 = vmul.f32 0.5, %v163
    %v165 = vsub.f32 1.5, %v164
    %v166 = vmul.f32 %v161, %v165
    %vm167 = vweird.f32 %v160
    %vm168 = vweird.f32 %v161
    %vm169 = vmor %vm167, %vm168
    %v170 = vsel %vm169, %v161, %v166
    %v171 = vmul.f32 %v159, %v170
    %v172 = vperm.slane %v121, 1
    %v173 = vmul.f32 %v171, %v172
    %v174 = vperm.slane %v121, 2
    %v175 = vadd.f32 %v173, %v174
    %176 = vst [vmem:[#allocation5] sm:$0xff] %v175
    // Predicated region
    $region18: #{tpu_custom_call.1} parent=1 // pred_check
      _
    $region19: #{tpu_custom_call.1} parent=1 // pred_check_branch
      %178 = sbr.rel (0) target = $region21
    $region20: #{tpu_custom_call.1} parent=1 // pred_region
      %180 = vsyncadd [#allocation4], 0
      %s182 = sshll.u32 [#allocation5], 4
      %s183 = int_to_ptr.vmem [resolvable:$true] %s182
      %s184 = sshll.u32 %s3, 4
      %s185 = int_to_ptr.hbm [resolvable:$true] %s184
      %187 = dma.vmem_to_hbm [thread:$0]  %s183, 128, %s185, [#allocation4]
    $region21: #{tpu_custom_call.1} parent=1 // pred_fallthru
      _
    // Predicated region
    $region22: #{tpu_custom_call.1} parent=1 // pred_check
      _
    $region23: #{tpu_custom_call.1} parent=1 // pred_check_branch
      %189 = sbr.rel (0) target = $region25
    $region24: #{tpu_custom_call.1} parent=1 // pred_region
      %191 = dma.done [#allocation4], 128
    $region25: #{tpu_custom_call.1} parent=1 // pred_fallthru
      _
    %192 = vsyncpa [#allocation3], 1
    %193 = vsyncpa [#allocation4], 1

</llo_original>
